<compile_context>
chip_gen: v7x
topology: tpu7x:2x2x1
jax: 0.10.0
libtpu: 0.0.40
codegen_flags: <defaults>
</compile_context>

<pallas_src>
import functools

import jax
import jax.numpy as jnp
from jax import lax
from jax.experimental import pallas as pl
from jax.experimental.pallas import tpu as pltpu


def _round_up(v, m):
    return -(-v // m) * m


def _tcnn_block_kernel(x_ref, w1, b1, w2, b2, w3, b3, w4, b4, o_ref, *, W, H, K):
    # x_ref : (1, Cp, H*W)      flattened (H, W), row-major
    # w_i   : (OCp, K*Cp_i)     im2col weights, column index = k*Cp_i + c
    # b_i   : (OCp, 1)
    # o_ref : (1, OCp, Hout*W)
    x = x_ref[0]                                           # (Cp, H*W)
    h = H
    for w_ref, b_ref in ((w1, b1), (w2, b2), (w3, b3), (w4, b4)):
        hout = h - K + 1
        # im2col: stack the K shifted (C, hout*W) windows along channels so
        # the whole layer is a single MXU contraction (K*C -> OC).
        cols = jnp.concatenate(
            [x[:, k * W:(k + hout) * W] for k in range(K)], axis=0)  # (K*C, hout*W)
        y = jnp.dot(w_ref[...], cols, preferred_element_type=jnp.float32)
        y = jnp.maximum(y + b_ref[...], 0.0)               # bias + fused ReLU
        x = y
        h = hout
    o_ref[0, :, :] = x.astype(o_ref.dtype)


@functools.partial(jax.jit, static_argnames=("filter_size", "num_filters"))
def tcnn_block_pallas(x, kernel_params, *, filter_size, num_filters):
    """Fused 4x [Conv2d((K,1), stride=1, pad=0) + ReLU] block.

    x: (N, C, H, W) float32 (NCHW, as in PyTorch)
    kernel_params: list of 4 (w_col (OCp, K*Cp), b_col (OCp, 1)) pairs.
    returns: (N, num_filters, H - 4*(K-1), W) float32
    """
    N, C, H, W = x.shape
    K = filter_size
    Hout = H - 4 * (K - 1)
    assert Hout >= 1, "input height too small for 4 valid convolutions"
    Cp = kernel_params[0][0].shape[1] // K       # padded in-channels (layer 1)
    OCp = kernel_params[-1][0].shape[0]          # padded out-channels (layer 4)

    x_flat = x.reshape(N, C, H * W)              # free (contiguous) reshape
    if Cp != C:
        x_flat = jnp.pad(x_flat, ((0, 0), (0, Cp - C), (0, 0)))

    flat_args = []
    in_specs = [pl.BlockSpec((1, Cp, H * W), lambda n: (n, 0, 0))]
    for w_col, b_col in kernel_params:
        flat_args.extend((w_col, b_col))
        in_specs.append(pl.BlockSpec(w_col.shape, lambda n: (0, 0)))
        in_specs.append(pl.BlockSpec(b_col.shape, lambda n: (0, 0)))

    kernel = functools.partial(_tcnn_block_kernel, W=W, H=H, K=K)

    out_flat = pl.pallas_call(
        kernel,
        out_shape=jax.ShapeDtypeStruct((N, OCp, Hout * W), x.dtype),
        grid_spec=pltpu.PrefetchScalarGridSpec(
            num_scalar_prefetch=0,
            grid=(N,),
            in_specs=in_specs,
            out_specs=pl.BlockSpec((1, OCp, Hout * W), lambda n: (n, 0, 0)),
        ),
        compiler_params=pltpu.CompilerParams(
            dimension_semantics=("parallel",)),
    )(x_flat, *flat_args)

    out = out_flat.reshape(N, OCp, Hout, W)
    if OCp != num_filters:
        out = out[:, :num_filters]
    return out


class TCNNConvBlockPallas:
    """Pallas port of TCNNConvBlock: four Conv2d((K,1)) + ReLU layers, fused."""

    def __init__(self, in_channels, num_filters, filter_size, key):
        self.filter_size = filter_size
        self.num_filters = num_filters
        self.params = []        # PyTorch-layout params (for the reference)
        cin = in_channels
        for _ in range(4):
            key, kw, kb = jax.random.split(key, 3)
            fan_in = cin * filter_size * 1
            bound = 1.0 / float(fan_in) ** 0.5
            w = jax.random.uniform(
                kw, (num_filters, cin, filter_size, 1),
                minval=-bound, maxval=bound, dtype=jnp.float32)
            b = jax.random.uniform(
                kb, (num_filters,), minval=-bound, maxval=bound,
                dtype=jnp.float32)
            self.params.append((w, b))
            cin = num_filters

        # Kernel-side layout: zero-pad channels to multiples of 8 (sublane
        # tile) and fold the K taps into the contraction: (OCp, K*Cp) with
        # column index k*Cp + c.  Padded rows/cols are zero => same result.
        self.kernel_params = []
        for w, b in self.params:
            OC, C, K, _ = w.shape
            Cp, OCp = _round_up(C, 8), _round_up(OC, 8)
            w_p = jnp.zeros((OCp, Cp, K), jnp.float32).at[:OC, :C, :].set(w[..., 0])
            w_col = jnp.transpose(w_p, (0, 2, 1)).reshape(OCp, K * Cp)
            b_col = jnp.zeros((OCp, 1), jnp.float32).at[:OC, 0].set(b)
            self.kernel_params.append((w_col, b_col))

    def __call__(self, x):
        return tcnn_block_pallas(
            x, self.kernel_params,
            filter_size=self.filter_size, num_filters=self.num_filters)


def _reference_forward(x, params):
    """Pure-JAX reference (lax conv) for validation."""
    for w, b in params:
        y = lax.conv_general_dilated(
            x, w, window_strides=(1, 1), padding="VALID",
            dimension_numbers=("NCHW", "OIHW", "NCHW"))
        x = jnp.maximum(y + b[None, :, None, None], 0.0)
    return x


if __name__ == "__main__":
    key = jax.random.PRNGKey(0)
    key, kx = jax.random.split(key)

    # Small shapes implied by the module: batch=2, in_channels=4,
    # num_filters=8, filter_size=3, spatial 16x16.
    N, C, H, W = 2, 4, 16, 16
    num_filters, filter_size = 8, 3

    x = jax.random.normal(kx, (N, C, H, W), dtype=jnp.float32)

    block = TCNNConvBlockPallas(C, num_filters, filter_size, key)

    out = jax.block_until_ready(block(x))

    ref = _reference_forward(x, block.params)
    assert out.shape == ref.shape, (out.shape, ref.shape)
    assert jnp.allclose(out, ref, rtol=1e-5, atol=1e-5), \
        float(jnp.max(jnp.abs(out - ref)))

    print("KERNEL_OK")
</pallas_src>

<mosaic_0001>
module attributes {stable_mosaic.version = 11 : i64} {
  func.func @_tcnn_block_kernel(%arg0: i32, %arg1: memref<1x8x256xf32, #tpu.memory_space<vmem>>, %arg2: memref<8x24xf32, #tpu.memory_space<vmem>>, %arg3: memref<8x1xf32, #tpu.memory_space<vmem>>, %arg4: memref<8x24xf32, #tpu.memory_space<vmem>>, %arg5: memref<8x1xf32, #tpu.memory_space<vmem>>, %arg6: memref<8x24xf32, #tpu.memory_space<vmem>>, %arg7: memref<8x1xf32, #tpu.memory_space<vmem>>, %arg8: memref<8x24xf32, #tpu.memory_space<vmem>>, %arg9: memref<8x1xf32, #tpu.memory_space<vmem>>, %arg10: memref<1x8x128xf32, #tpu.memory_space<vmem>>) attributes {dimension_semantics = [#tpu.dimension_semantics<parallel>], iteration_bounds = array<i64: 2>, scalar_prefetch = 0 : i64, scratch_operands = 0 : i64, tpu.core_type = #tpu.core_type<tc>, window_params = [{transform_indices = @transform_0, window_bounds = array<i64: 1, 8, 256>}, {pipeline_mode = #tpu.pipeline_mode<synchronous>, transform_indices = @transform_1, window_bounds = array<i64: 8, 24>}, {pipeline_mode = #tpu.pipeline_mode<synchronous>, transform_indices = @transform_2, window_bounds = array<i64: 8, 1>}, {pipeline_mode = #tpu.pipeline_mode<synchronous>, transform_indices = @transform_3, window_bounds = array<i64: 8, 24>}, {pipeline_mode = #tpu.pipeline_mode<synchronous>, transform_indices = @transform_4, window_bounds = array<i64: 8, 1>}, {pipeline_mode = #tpu.pipeline_mode<synchronous>, transform_indices = @transform_5, window_bounds = array<i64: 8, 24>}, {pipeline_mode = #tpu.pipeline_mode<synchronous>, transform_indices = @transform_6, window_bounds = array<i64: 8, 1>}, {pipeline_mode = #tpu.pipeline_mode<synchronous>, transform_indices = @transform_7, window_bounds = array<i64: 8, 24>}, {pipeline_mode = #tpu.pipeline_mode<synchronous>, transform_indices = @transform_8, window_bounds = array<i64: 8, 1>}, {transform_indices = @transform_9, window_bounds = array<i64: 1, 8, 128>}]} {
    %c0 = arith.constant 0 : index
    %c0_0 = arith.constant 0 : index
    %c0_1 = arith.constant 0 : index
    %0 = vector.load %arg1[%c0, %c0_0, %c0_1] : memref<1x8x256xf32, #tpu.memory_space<vmem>>, vector<1x8x256xf32>
    %1 = vector.shape_cast %0 : vector<1x8x256xf32> to vector<8x256xf32>
    %2 = vector.extract_strided_slice %1 {offsets = [0, 0], sizes = [8, 224], strides = [1, 1]} : vector<8x256xf32> to vector<8x224xf32>
    %3 = vector.extract_strided_slice %1 {offsets = [0, 16], sizes = [8, 224], strides = [1, 1]} : vector<8x256xf32> to vector<8x224xf32>
    %4 = vector.extract_strided_slice %1 {offsets = [0, 32], sizes = [8, 224], strides = [1, 1]} : vector<8x256xf32> to vector<8x224xf32>
    %5 = tpu.concatenate %2, %3, %4 in 0 : vector<8x224xf32>, vector<8x224xf32>, vector<8x224xf32> -> vector<24x224xf32>
    %c0_2 = arith.constant 0 : index
    %c0_3 = arith.constant 0 : index
    %6 = vector.load %arg2[%c0_2, %c0_3] : memref<8x24xf32, #tpu.memory_space<vmem>>, vector<8x24xf32>
    %cst = arith.constant dense<0.000000e+00> : vector<8x224xf32>
    %7 = tpu.matmul %6, %5, %cst {dimension_numbers = #tpu.dot_dimension_numbers<[1], [0], [0], [1], [0, 0, 1, 1], [], []>} : vector<8x24xf32>, vector<24x224xf32>, vector<8x224xf32> -> vector<8x224xf32>
    %c0_4 = arith.constant 0 : index
    %c0_5 = arith.constant 0 : index
    %8 = vector.load %arg3[%c0_4, %c0_5] : memref<8x1xf32, #tpu.memory_space<vmem>>, vector<8x1xf32>
    %9 = vector.broadcast %8 : vector<8x1xf32> to vector<8x224xf32>
    %10 = arith.addf %7, %9 : vector<8x224xf32>
    %cst_6 = arith.constant 0.000000e+00 : f32
    %11 = vector.broadcast %cst_6 : f32 to vector<8x224xf32>
    %12 = arith.maximumf %10, %11 : vector<8x224xf32>
    %13 = vector.extract_strided_slice %12 {offsets = [0, 0], sizes = [8, 192], strides = [1, 1]} : vector<8x224xf32> to vector<8x192xf32>
    %14 = vector.extract_strided_slice %12 {offsets = [0, 16], sizes = [8, 192], strides = [1, 1]} : vector<8x224xf32> to vector<8x192xf32>
    %15 = vector.extract_strided_slice %12 {offsets = [0, 32], sizes = [8, 192], strides = [1, 1]} : vector<8x224xf32> to vector<8x192xf32>
    %16 = tpu.concatenate %13, %14, %15 in 0 : vector<8x192xf32>, vector<8x192xf32>, vector<8x192xf32> -> vector<24x192xf32>
    %c0_7 = arith.constant 0 : index
    %c0_8 = arith.constant 0 : index
    %17 = vector.load %arg4[%c0_7, %c0_8] : memref<8x24xf32, #tpu.memory_space<vmem>>, vector<8x24xf32>
    %cst_9 = arith.constant dense<0.000000e+00> : vector<8x192xf32>
    %18 = tpu.matmul %17, %16, %cst_9 {dimension_numbers = #tpu.dot_dimension_numbers<[1], [0], [0], [1], [0, 0, 1, 1], [], []>} : vector<8x24xf32>, vector<24x192xf32>, vector<8x192xf32> -> vector<8x192xf32>
    %c0_10 = arith.constant 0 : index
    %c0_11 = arith.constant 0 : index
    %19 = vector.load %arg5[%c0_10, %c0_11] : memref<8x1xf32, #tpu.memory_space<vmem>>, vector<8x1xf32>
    %20 = vector.broadcast %19 : vector<8x1xf32> to vector<8x192xf32>
    %21 = arith.addf %18, %20 : vector<8x192xf32>
    %cst_12 = arith.constant 0.000000e+00 : f32
    %22 = vector.broadcast %cst_12 : f32 to vector<8x192xf32>
    %23 = arith.maximumf %21, %22 : vector<8x192xf32>
    %24 = vector.extract_strided_slice %23 {offsets = [0, 0], sizes = [8, 160], strides = [1, 1]} : vector<8x192xf32> to vector<8x160xf32>
    %25 = vector.extract_strided_slice %23 {offsets = [0, 16], sizes = [8, 160], strides = [1, 1]} : vector<8x192xf32> to vector<8x160xf32>
    %26 = vector.extract_strided_slice %23 {offsets = [0, 32], sizes = [8, 160], strides = [1, 1]} : vector<8x192xf32> to vector<8x160xf32>
    %27 = tpu.concatenate %24, %25, %26 in 0 : vector<8x160xf32>, vector<8x160xf32>, vector<8x160xf32> -> vector<24x160xf32>
    %c0_13 = arith.constant 0 : index
    %c0_14 = arith.constant 0 : index
    %28 = vector.load %arg6[%c0_13, %c0_14] : memref<8x24xf32, #tpu.memory_space<vmem>>, vector<8x24xf32>
    %cst_15 = arith.constant dense<0.000000e+00> : vector<8x160xf32>
    %29 = tpu.matmul %28, %27, %cst_15 {dimension_numbers = #tpu.dot_dimension_numbers<[1], [0], [0], [1], [0, 0, 1, 1], [], []>} : vector<8x24xf32>, vector<24x160xf32>, vector<8x160xf32> -> vector<8x160xf32>
    %c0_16 = arith.constant 0 : index
    %c0_17 = arith.constant 0 : index
    %30 = vector.load %arg7[%c0_16, %c0_17] : memref<8x1xf32, #tpu.memory_space<vmem>>, vector<8x1xf32>
    %31 = vector.broadcast %30 : vector<8x1xf32> to vector<8x160xf32>
    %32 = arith.addf %29, %31 : vector<8x160xf32>
    %cst_18 = arith.constant 0.000000e+00 : f32
    %33 = vector.broadcast %cst_18 : f32 to vector<8x160xf32>
    %34 = arith.maximumf %32, %33 : vector<8x160xf32>
    %35 = vector.extract_strided_slice %34 {offsets = [0, 0], sizes = [8, 128], strides = [1, 1]} : vector<8x160xf32> to vector<8x128xf32>
    %36 = vector.extract_strided_slice %34 {offsets = [0, 16], sizes = [8, 128], strides = [1, 1]} : vector<8x160xf32> to vector<8x128xf32>
    %37 = vector.extract_strided_slice %34 {offsets = [0, 32], sizes = [8, 128], strides = [1, 1]} : vector<8x160xf32> to vector<8x128xf32>
    %38 = tpu.concatenate %35, %36, %37 in 0 : vector<8x128xf32>, vector<8x128xf32>, vector<8x128xf32> -> vector<24x128xf32>
    %c0_19 = arith.constant 0 : index
    %c0_20 = arith.constant 0 : index
    %39 = vector.load %arg8[%c0_19, %c0_20] : memref<8x24xf32, #tpu.memory_space<vmem>>, vector<8x24xf32>
    %cst_21 = arith.constant dense<0.000000e+00> : vector<8x128xf32>
    %40 = tpu.matmul %39, %38, %cst_21 {dimension_numbers = #tpu.dot_dimension_numbers<[1], [0], [0], [1], [0, 0, 1, 1], [], []>} : vector<8x24xf32>, vector<24x128xf32>, vector<8x128xf32> -> vector<8x128xf32>
    %c0_22 = arith.constant 0 : index
    %c0_23 = arith.constant 0 : index
    %41 = vector.load %arg9[%c0_22, %c0_23] : memref<8x1xf32, #tpu.memory_space<vmem>>, vector<8x1xf32>
    %42 = vector.broadcast %41 : vector<8x1xf32> to vector<8x128xf32>
    %43 = arith.addf %40, %42 : vector<8x128xf32>
    %cst_24 = arith.constant 0.000000e+00 : f32
    %44 = vector.broadcast %cst_24 : f32 to vector<8x128xf32>
    %45 = arith.maximumf %43, %44 : vector<8x128xf32>
    %c0_25 = arith.constant 0 : index
    %c0_26 = arith.constant 0 : index
    %c0_27 = arith.constant 0 : index
    %46 = vector.load %arg10[%c0_25, %c0_26, %c0_27] : memref<1x8x128xf32, #tpu.memory_space<vmem>>, vector<1x8x128xf32>
    %47 = vector.shape_cast %46 : vector<1x8x128xf32> to vector<8x128xf32>
    %48 = vector.shape_cast %45 : vector<8x128xf32> to vector<1x8x128xf32>
    tpu.vector_store %arg10[%c0_25, %c0_26, %c0_27], %48 {strides = array<i32>} : memref<1x8x128xf32, #tpu.memory_space<vmem>>, vector<1x8x128xf32>,
    return
  }
  func.func @transform_0(%arg0: i32) -> (i32, i32, i32) {
    %c0_i32 = arith.constant 0 : i32
    %c0_i32_0 = arith.constant 0 : i32
    %c0_i32_1 = arith.constant 0 : i32
    return %arg0, %c0_i32, %c0_i32_0 : i32, i32, i32
  }
  func.func @transform_1(%arg0: i32) -> (i32, i32) {
    %c0_i32 = arith.constant 0 : i32
    %c0_i32_0 = arith.constant 0 : i32
    %c0_i32_1 = arith.constant 0 : i32
    return %c0_i32, %c0_i32_0 : i32, i32
  }
  func.func @transform_2(%arg0: i32) -> (i32, i32) {
    %c0_i32 = arith.constant 0 : i32
    %c0_i32_0 = arith.constant 0 : i32
    %c0_i32_1 = arith.constant 0 : i32
    return %c0_i32, %c0_i32_0 : i32, i32
  }
  func.func @transform_3(%arg0: i32) -> (i32, i32) {
    %c0_i32 = arith.constant 0 : i32
    %c0_i32_0 = arith.constant 0 : i32
    %c0_i32_1 = arith.constant 0 : i32
    return %c0_i32, %c0_i32_0 : i32, i32
  }
  func.func @transform_4(%arg0: i32) -> (i32, i32) {
    %c0_i32 = arith.constant 0 : i32
    %c0_i32_0 = arith.constant 0 : i32
    %c0_i32_1 = arith.constant 0 : i32
    return %c0_i32, %c0_i32_0 : i32, i32
  }
  func.func @transform_5(%arg0: i32) -> (i32, i32) {
    %c0_i32 = arith.constant 0 : i32
    %c0_i32_0 = arith.constant 0 : i32
    %c0_i32_1 = arith.constant 0 : i32
    return %c0_i32, %c0_i32_0 : i32, i32
  }
  func.func @transform_6(%arg0: i32) -> (i32, i32) {
    %c0_i32 = arith.constant 0 : i32
    %c0_i32_0 = arith.constant 0 : i32
    %c0_i32_1 = arith.constant 0 : i32
    return %c0_i32, %c0_i32_0 : i32, i32
  }
  func.func @transform_7(%arg0: i32) -> (i32, i32) {
    %c0_i32 = arith.constant 0 : i32
    %c0_i32_0 = arith.constant 0 : i32
    %c0_i32_1 = arith.constant 0 : i32
    return %c0_i32, %c0_i32_0 : i32, i32
  }
  func.func @transform_8(%arg0: i32) -> (i32, i32) {
    %c0_i32 = arith.constant 0 : i32
    %c0_i32_0 = arith.constant 0 : i32
    %c0_i32_1 = arith.constant 0 : i32
    return %c0_i32, %c0_i32_0 : i32, i32
  }
  func.func @transform_9(%arg0: i32) -> (i32, i32, i32) {
    %c0_i32 = arith.constant 0 : i32
    %c0_i32_0 = arith.constant 0 : i32
    %c0_i32_1 = arith.constant 0 : i32
    return %arg0, %c0_i32, %c0_i32_0 : i32, i32, i32
  }
}

</mosaic_0001>

<llo_original>
// kernel: tcnn_block_pallas.1
$region0: #{tcnn_block_pallas.1}
  #allocation0 [shape = 'u32[]', space=smem, size = 0x4, offset = 0x4, fixed_abs, tag = 'smem constant byte address 0x4 - core index']
  #allocation1 [shape = 'u32[144,128]{1,0:T(1,128)}', space=vmem, size = 0x12000, scoped, tag = 'internal scratch']
  %s0 = inlined_call_operand.vmem [shape: f32[2,8,256], index: 0, kind: input, shape index: {}]
  %s1 = inlined_call_operand.vmem [shape: f32[8,24], index: 1, kind: input, shape index: {}]
  %s2 = inlined_call_operand.vmem [shape: f32[8,1], index: 2, kind: input, shape index: {}]
  %s3 = inlined_call_operand.vmem [shape: f32[8,24], index: 3, kind: input, shape index: {}]
  %s4 = inlined_call_operand.vmem [shape: f32[8,1], index: 4, kind: input, shape index: {}]
  %s5 = inlined_call_operand.vmem [shape: f32[8,24], index: 5, kind: input, shape index: {}]
  %s6 = inlined_call_operand.vmem [shape: f32[8,1], index: 6, kind: input, shape index: {}]
  %s7 = inlined_call_operand.vmem [shape: f32[8,24], index: 7, kind: input, shape index: {}]
  %s8 = inlined_call_operand.vmem [shape: f32[8,1], index: 8, kind: input, shape index: {}]
  %s9 = inlined_call_operand.vmem [shape: f32[2,8,128], index: 9, kind: output, shape index: {}]
  %s10 = sld [smem:[#allocation0]]
  $region69: #{tcnn_block_pallas.1} parent=0
    _
  %s12 = ssub.s32 1, %s10
  %s13 = scalar_select 0, %s12, %s10
  loop: start=0, step=1, limit=4
  $region2: #{tcnn_block_pallas.1} parent=0 // loop_pre_header
    _
  $region3: #{tcnn_block_pallas.1} parent=0 // loop_header
    %s15 = sphi 0, %s19
    %p16 = scmp.ge.s32.totalorder %s15, 4
    %s25 = sphi 0, %s27
    %s28 = sphi 0, %s25
    %s29 = sphi 0, %s28
    %s45 = sphi 0, %s29
    %s49 = sphi 0, %s49
    %s51 = sphi 0, %s49
    %s52 = sphi 0, %s51
    %s66 = sphi 0, %s52
    %s70 = sphi 0, %s70
    %s72 = sphi 0, %s70
    %s73 = sphi 0, %s72
    %s87 = sphi 0, %s73
    %s91 = sphi 0, %s91
    %s93 = sphi 0, %s91
    %s94 = sphi 0, %s93
    %s108 = sphi 0, %s94
    %s112 = sphi 0, %s112
    %s114 = sphi 0, %s112
    %s115 = sphi 0, %s114
    %s129 = sphi 0, %s115
    %s133 = sphi 0, %s133
    %s135 = sphi 0, %s133
    %s136 = sphi 0, %s135
    %s150 = sphi 0, %s136
    %s154 = sphi 0, %s154
    %s156 = sphi 0, %s154
    %s157 = sphi 0, %s156
    %s171 = sphi 0, %s157
    %s175 = sphi 0, %s175
    %s177 = sphi 0, %s175
    %s178 = sphi 0, %s177
    %s192 = sphi 0, %s178
    %s196 = sphi 0, %s196
    %s198 = sphi 0, %s196
    %s199 = sphi 0, %s198
    %s213 = sphi 0, %s199
    %s219 = sphi 0, %s221
    %s222 = sphi 0, %s219
    %s223 = sphi 0, %s222
    %s239 = sphi 0, %s223
  $region4: #{tcnn_block_pallas.1} parent=0 // loop_header_branch
    %18 = sbr.rel (%p16) target = $region8
  $region5: #{tcnn_block_pallas.1} parent=0 // loop_body
    %s20 = ssub.s32 %s15, 1
    %s21 = ssub.s32 %s15, 2
    %s22 = sadd.s32 %s15, 1
    %s23 = ssub.s32 %s15, %s22
    %p24 = scmp.eq.s32.totalorder %s23, 0
    %s26 = sadd.s32 %s25, 1
    %s27 = scalar_select %p24, %s25, %s26
    %p30 = pneg %p24
    %p31 = scmp.eq.s32.totalorder %s15, 1
    %p32 = por %p30, %p31
    %p33 = scmp.ne.s32.totalorder %s25, %s28
    %p34 = scmp.eq.s32.totalorder %s15, 0
    %p35 = por %p33, %p34
    %p36 = scmp.ne.s32.totalorder %s25, %s28
    %p37 = scmp.eq.s32.totalorder %s20, 1
    %p38 = por %p36, %p37
    %p39 = scmp.ne.s32.totalorder %s28, %s29
    %p40 = scmp.eq.s32.totalorder %s20, 0
    %p41 = por %p39, %p40
    %p42 = scmp.ne.s32.totalorder %s28, %s29
    %p43 = scmp.eq.s32.totalorder %s21, 1
    %p44 = por %p42, %p43
    %p46 = scmp.ne.s32.totalorder %s29, %s45
    %p47 = scmp.eq.s32.totalorder %s21, 0
    %p48 = por %p46, %p47
    %s50 = sadd.s32 %s49, 1
    %p53 = scmp.eq.s32.totalorder %s15, 1
    %p54 = scmp.ne.s32.totalorder %s49, %s51
    %p55 = scmp.eq.s32.totalorder %s15, 0
    %p56 = por %p54, %p55
    %p57 = scmp.ne.s32.totalorder %s49, %s51
    %p58 = scmp.eq.s32.totalorder %s20, 1
    %p59 = por %p57, %p58
    %p60 = scmp.ne.s32.totalorder %s51, %s52
    %p61 = scmp.eq.s32.totalorder %s20, 0
    %p62 = por %p60, %p61
    %p63 = scmp.ne.s32.totalorder %s51, %s52
    %p64 = scmp.eq.s32.totalorder %s21, 1
    %p65 = por %p63, %p64
    %p67 = scmp.ne.s32.totalorder %s52, %s66
    %p68 = scmp.eq.s32.totalorder %s21, 0
    %p69 = por %p67, %p68
    %s71 = sadd.s32 %s70, 1
    %p74 = scmp.eq.s32.totalorder %s15, 1
    %p75 = scmp.ne.s32.totalorder %s70, %s72
    %p76 = scmp.eq.s32.totalorder %s15, 0
    %p77 = por %p75, %p76
    %p78 = scmp.ne.s32.totalorder %s70, %s72
    %p79 = scmp.eq.s32.totalorder %s20, 1
    %p80 = por %p78, %p79
    %p81 = scmp.ne.s32.totalorder %s72, %s73
    %p82 = scmp.eq.s32.totalorder %s20, 0
    %p83 = por %p81, %p82
    %p84 = scmp.ne.s32.totalorder %s72, %s73
    %p85 = scmp.eq.s32.totalorder %s21, 1
    %p86 = por %p84, %p85
    %p88 = scmp.ne.s32.totalorder %s73, %s87
    %p89 = scmp.eq.s32.totalorder %s21, 0
    %p90 = por %p88, %p89
    %s92 = sadd.s32 %s91, 1
    %p95 = scmp.eq.s32.totalorder %s15, 1
    %p96 = scmp.ne.s32.totalorder %s91, %s93
    %p97 = scmp.eq.s32.totalorder %s15, 0
    %p98 = por %p96, %p97
    %p99 = scmp.ne.s32.totalorder %s91, %s93
    %p100 = scmp.eq.s32.totalorder %s20, 1
    %p101 = por %p99, %p100
    %p102 = scmp.ne.s32.totalorder %s93, %s94
    %p103 = scmp.eq.s32.totalorder %s20, 0
    %p104 = por %p102, %p103
    %p105 = scmp.ne.s32.totalorder %s93, %s94
    %p106 = scmp.eq.s32.totalorder %s21, 1
    %p107 = por %p105, %p106
    %p109 = scmp.ne.s32.totalorder %s94, %s108
    %p110 = scmp.eq.s32.totalorder %s21, 0
    %p111 = por %p109, %p110
    %s113 = sadd.s32 %s112, 1
    %p116 = scmp.eq.s32.totalorder %s15, 1
    %p117 = scmp.ne.s32.totalorder %s112, %s114
    %p118 = scmp.eq.s32.totalorder %s15, 0
    %p119 = por %p117, %p118
    %p120 = scmp.ne.s32.totalorder %s112, %s114
    %p121 = scmp.eq.s32.totalorder %s20, 1
    %p122 = por %p120, %p121
    %p123 = scmp.ne.s32.totalorder %s114, %s115
    %p124 = scmp.eq.s32.totalorder %s20, 0
    %p125 = por %p123, %p124
    %p126 = scmp.ne.s32.totalorder %s114, %s115
    %p127 = scmp.eq.s32.totalorder %s21, 1
    %p128 = por %p126, %p127
    %p130 = scmp.ne.s32.totalorder %s115, %s129
    %p131 = scmp.eq.s32.totalorder %s21, 0
    %p132 = por %p130, %p131
    %s134 = sadd.s32 %s133, 1
    %p137 = scmp.eq.s32.totalorder %s15, 1
    %p138 = scmp.ne.s32.totalorder %s133, %s135
    %p139 = scmp.eq.s32.totalorder %s15, 0
    %p140 = por %p138, %p139
    %p141 = scmp.ne.s32.totalorder %s133, %s135
    %p142 = scmp.eq.s32.totalorder %s20, 1
    %p143 = por %p141, %p142
    %p144 = scmp.ne.s32.totalorder %s135, %s136
    %p145 = scmp.eq.s32.totalorder %s20, 0
    %p146 = por %p144, %p145
    %p147 = scmp.ne.s32.totalorder %s135, %s136
    %p148 = scmp.eq.s32.totalorder %s21, 1
    %p149 = por %p147, %p148
    %p151 = scmp.ne.s32.totalorder %s136, %s150
    %p152 = scmp.eq.s32.totalorder %s21, 0
    %p153 = por %p151, %p152
    %s155 = sadd.s32 %s154, 1
    %p158 = scmp.eq.s32.totalorder %s15, 1
    %p159 = scmp.ne.s32.totalorder %s154, %s156
    %p160 = scmp.eq.s32.totalorder %s15, 0
    %p161 = por %p159, %p160
    %p162 = scmp.ne.s32.totalorder %s154, %s156
    %p163 = scmp.eq.s32.totalorder %s20, 1
    %p164 = por %p162, %p163
    %p165 = scmp.ne.s32.totalorder %s156, %s157
    %p166 = scmp.eq.s32.totalorder %s20, 0
    %p167 = por %p165, %p166
    %p168 = scmp.ne.s32.totalorder %s156, %s157
    %p169 = scmp.eq.s32.totalorder %s21, 1
    %p170 = por %p168, %p169
    %p172 = scmp.ne.s32.totalorder %s157, %s171
    %p173 = scmp.eq.s32.totalorder %s21, 0
    %p174 = por %p172, %p173
    %s176 = sadd.s32 %s175, 1
    %p179 = scmp.eq.s32.totalorder %s15, 1
    %p180 = scmp.ne.s32.totalorder %s175, %s177
    %p181 = scmp.eq.s32.totalorder %s15, 0
    %p182 = por %p180, %p181
    %p183 = scmp.ne.s32.totalorder %s175, %s177
    %p184 = scmp.eq.s32.totalorder %s20, 1
    %p185 = por %p183, %p184
    %p186 = scmp.ne.s32.totalorder %s177, %s178
    %p187 = scmp.eq.s32.totalorder %s20, 0
    %p188 = por %p186, %p187
    %p189 = scmp.ne.s32.totalorder %s177, %s178
    %p190 = scmp.eq.s32.totalorder %s21, 1
    %p191 = por %p189, %p190
    %p193 = scmp.ne.s32.totalorder %s178, %s192
    %p194 = scmp.eq.s32.totalorder %s21, 0
    %p195 = por %p193, %p194
    %s197 = sadd.s32 %s196, 1
    %p200 = scmp.eq.s32.totalorder %s15, 1
    %p201 = scmp.ne.s32.totalorder %s196, %s198
    %p202 = scmp.eq.s32.totalorder %s15, 0
    %p203 = por %p201, %p202
    %p204 = scmp.ne.s32.totalorder %s196, %s198
    %p205 = scmp.eq.s32.totalorder %s20, 1
    %p206 = por %p204, %p205
    %p207 = scmp.ne.s32.totalorder %s198, %s199
    %p208 = scmp.eq.s32.totalorder %s20, 0
    %p209 = por %p207, %p208
    %p210 = scmp.ne.s32.totalorder %s198, %s199
    %p211 = scmp.eq.s32.totalorder %s21, 1
    %p212 = por %p210, %p211
    %p214 = scmp.ne.s32.totalorder %s199, %s213
    %p215 = scmp.eq.s32.totalorder %s21, 0
    %p216 = por %p214, %p215
    %s217 = ssub.s32 %s15, %s22
    %p218 = scmp.eq.s32.totalorder %s217, 0
    %s220 = sadd.s32 %s219, 1
    %s221 = scalar_select %p218, %s219, %s220
    %p224 = pneg %p218
    %p225 = scmp.eq.s32.totalorder %s15, 1
    %p226 = por %p224, %p225
    %p227 = scmp.ne.s32.totalorder %s219, %s222
    %p228 = scmp.eq.s32.totalorder %s15, 0
    %p229 = por %p227, %p228
    %p230 = scmp.ne.s32.totalorder %s219, %s222
    %p231 = scmp.eq.s32.totalorder %s20, 1
    %p232 = por %p230, %p231
    %p233 = scmp.ne.s32.totalorder %s222, %s223
    %p234 = scmp.eq.s32.totalorder %s20, 0
    %p235 = por %p233, %p234
    %p236 = scmp.ne.s32.totalorder %s222, %s223
    %p237 = scmp.eq.s32.totalorder %s21, 1
    %p238 = por %p236, %p237
    %p240 = scmp.ne.s32.totalorder %s223, %s239
    %p241 = scmp.eq.s32.totalorder %s21, 0
    %p242 = por %p240, %p241
    %p243 = scmp.le.s32.totalorder 1, %s15
    %p244 = scmp.lt.s32.totalorder %s15, 3
    %p245 = pnand %p243, %p244
    %p246 = pneg %p245
    // Predicated region
    $region9: #{tcnn_block_pallas.1} parent=5 // pred_check
      _
    $region10: #{tcnn_block_pallas.1} parent=5 // pred_check_branch
      %248 = sbr.rel (%p245) target = $region12
    $region11: #{tcnn_block_pallas.1} parent=5 // pred_region
      %s249 = ssub.s32 %s15, 1
      // Predicated region
      $region13: #{tcnn_block_pallas.1} parent=11 // pred_check
        %p250 = pneg %p62
      $region14: #{tcnn_block_pallas.1} parent=11 // pred_check_branch
        %252 = sbr.rel (%p250) target = $region16
      $region15: #{tcnn_block_pallas.1} parent=11 // pred_region
        _
      $region16: #{tcnn_block_pallas.1} parent=11 // pred_fallthru
        _
      // Predicated region
      $region17: #{tcnn_block_pallas.1} parent=11 // pred_check
        %p253 = pneg %p83
      $region18: #{tcnn_block_pallas.1} parent=11 // pred_check_branch
        %255 = sbr.rel (%p253) target = $region20
      $region19: #{tcnn_block_pallas.1} parent=11 // pred_region
        _
      $region20: #{tcnn_block_pallas.1} parent=11 // pred_fallthru
        _
      // Predicated region
      $region21: #{tcnn_block_pallas.1} parent=11 // pred_check
        %p256 = pneg %p104
      $region22: #{tcnn_block_pallas.1} parent=11 // pred_check_branch
        %258 = sbr.rel (%p256) target = $region24
      $region23: #{tcnn_block_pallas.1} parent=11 // pred_region
        _
      $region24: #{tcnn_block_pallas.1} parent=11 // pred_fallthru
        _
      // Predicated region
      $region25: #{tcnn_block_pallas.1} parent=11 // pred_check
        %p259 = pneg %p125
      $region26: #{tcnn_block_pallas.1} parent=11 // pred_check_branch
        %261 = sbr.rel (%p259) target = $region28
      $region27: #{tcnn_block_pallas.1} parent=11 // pred_region
        _
      $region28: #{tcnn_block_pallas.1} parent=11 // pred_fallthru
        _
      // Predicated region
      $region29: #{tcnn_block_pallas.1} parent=11 // pred_check
        %p262 = pneg %p146
      $region30: #{tcnn_block_pallas.1} parent=11 // pred_check_branch
        %264 = sbr.rel (%p262) target = $region32
      $region31: #{tcnn_block_pallas.1} parent=11 // pred_region
        _
      $region32: #{tcnn_block_pallas.1} parent=11 // pred_fallthru
        _
      // Predicated region
      $region33: #{tcnn_block_pallas.1} parent=11 // pred_check
        %p265 = pneg %p167
      $region34: #{tcnn_block_pallas.1} parent=11 // pred_check_branch
        %267 = sbr.rel (%p265) target = $region36
      $region35: #{tcnn_block_pallas.1} parent=11 // pred_region
        _
      $region36: #{tcnn_block_pallas.1} parent=11 // pred_fallthru
        _
      // Predicated region
      $region37: #{tcnn_block_pallas.1} parent=11 // pred_check
        %p268 = pneg %p188
      $region38: #{tcnn_block_pallas.1} parent=11 // pred_check_branch
        %270 = sbr.rel (%p268) target = $region40
      $region39: #{tcnn_block_pallas.1} parent=11 // pred_region
        _
      $region40: #{tcnn_block_pallas.1} parent=11 // pred_fallthru
        _
      // Predicated region
      $region41: #{tcnn_block_pallas.1} parent=11 // pred_check
        %p271 = pneg %p209
      $region42: #{tcnn_block_pallas.1} parent=11 // pred_check_branch
        %273 = sbr.rel (%p271) target = $region44
      $region43: #{tcnn_block_pallas.1} parent=11 // pred_region
        _
      $region44: #{tcnn_block_pallas.1} parent=11 // pred_fallthru
        _
    $region12: #{tcnn_block_pallas.1} parent=5 // pred_fallthru
      _
    %p274 = scmp.lt.s32.totalorder %s15, 2
    // Predicated region
    $region45: #{tcnn_block_pallas.1} parent=5 // pred_check
      %p275 = pneg %p274
    $region46: #{tcnn_block_pallas.1} parent=5 // pred_check_branch
      %277 = sbr.rel (%p275) target = $region48
    $region47: #{tcnn_block_pallas.1} parent=5 // pred_region
      // Predicated region
      $region49: #{tcnn_block_pallas.1} parent=47 // pred_check
        %p278 = pneg %p35
      $region50: #{tcnn_block_pallas.1} parent=47 // pred_check_branch
        %280 = sbr.rel (%p278) target = $region52
      $region51: #{tcnn_block_pallas.1} parent=47 // pred_region
        %p281 = scmp.lt.s32.totalorder %s15, 1
        %s282 = scalar_select %p281, %s15, 1
        %s283 = smul.addr %s282, 2
        %s284 = smul.addr %s283, 8
        %s285 = scalar_lea.vmem %s0, %s284
      $region52: #{tcnn_block_pallas.1} parent=47 // pred_fallthru
        _
    $region48: #{tcnn_block_pallas.1} parent=5 // pred_fallthru
      _
    %p286 = scmp.le.s32.totalorder 1, %s15
    %p287 = scmp.lt.s32.totalorder %s15, 3
    %p288 = pnand %p286, %p287
    %p289 = pneg %p288
    // Predicated region
    $region53: #{tcnn_block_pallas.1} parent=5 // pred_check
      _
    $region54: #{tcnn_block_pallas.1} parent=5 // pred_check_branch
      %291 = sbr.rel (%p288) target = $region56
    $region55: #{tcnn_block_pallas.1} parent=5 // pred_region
      %s292 = ssub.s32 %s15, 1
      %p293 = scmp.lt.s32.totalorder %s20, 1
      %s294 = scalar_select %p293, %s20, 1
      %s295 = smul.addr %s294, 2
      %s296 = smul.addr %s295, 8
      %s297 = scalar_lea.vmem %s0, %s296
      %p298 = pneg %p41
      %p299 = pneg %p38
      %p300 = pneg %p62
      %p301 = pneg %p59
      %p302 = pneg %p83
      %p303 = pneg %p80
      %p304 = pneg %p104
      %p305 = pneg %p101
      %p306 = pneg %p125
      %p307 = pneg %p122
      %p308 = pneg %p146
      %p309 = pneg %p143
      %p310 = pneg %p167
      %p311 = pneg %p164
      %p312 = pneg %p188
      %p313 = pneg %p185
      %p314 = pneg %p209
      %p315 = pneg %p206
      %p316 = pneg %p235
      %p317 = pneg %p232
      %p318 = scmp.lt.s32.totalorder %s20, 1
      %s319 = scalar_select %p318, %s20, 1
      %s320 = smul.addr %s319, 8
      %s321 = scalar_lea.vmem %s9, %s320
      %p322 = scmp.lt.s32.totalorder %s20, 1
      %s323 = scalar_select %p322, %s20, 1
      %s324 = smul.addr %s323, 2
      %s325 = smul.addr %s324, 8
      %s326 = scalar_lea.vmem %s0, %s325
      %p327 = scmp.lt.s32.totalorder %s20, 1
      %s328 = scalar_select %p327, %s20, 1
      %s329 = smul.addr %s328, 8
      %s330 = scalar_lea.vmem %s9, %s329
      %v331 = vld [vmem:[%s326] sm:$0xff]
      %v332 = vld [vmem:[%s326 + $0x8] sm:$0xff]
      %335 = vrot.lane.b32.xlu0 %v331, 112
      %v336 = vpop.permute.xlu0 %335
      %337 = vrot.lane.b32.xlu0 %v332, 112
      %v338 = vpop.permute.xlu0 %337
      %vm339 = vcmask 916480
      %v340 = vsel %vm339, %v336, %v338
      %343 = vrot.lane.b32.xlu0 %v331, 96
      %v344 = vpop.permute.xlu0 %343
      %345 = vrot.lane.b32.xlu0 %v332, 96
      %v346 = vpop.permute.xlu0 %345
      %vm347 = vcmask 785408
      %v348 = vsel %vm347, %v344, %v346
      %v351 = vld [vmem:[%s1] sm:$0xff]
      %v352 = vld [vmem:[%s2] sm:$0xff]
      %354 = vset.pattern.permute.xlu0 0
      %355 = vperm.xlu0 %354, %v352
      %v356 = vpop.permute.xlu0 %355
      %vm358 = vcmask 195584
      %v360 = vsel %vm358, %v351, 0
      %362 = vmatprep.subr.mxu0 %v332
      %363 = vmatpush1.msra.mxu0 %v331
      %364 = vmatprep.subr.mxu0 %v338
      %365 = vmatpush1.msra.mxu0 %v340
      %366 = vmatprep.subr.mxu0 %v346
      %367 = vmatpush1.msra.mxu0 %v348
      %368 = vmatprep.subr.mxu0 0.0
      %369 = vmatpush1.msra.mxu0 0.0
      %370 = vmatprep.subr.mxu0 0.0
      %371 = vmatpush1.msra.mxu0 0.0
      %372 = vmatprep.subr.mxu0 0.0
      %373 = vmatpush1.msra.mxu0 0.0
      %374 = vmatprep.subr.mxu0 0.0
      %375 = vmatpush1.msra.mxu0 0.0
      %376 = vmatprep.subr.mxu0 0.0
      %377 = vmatpush1.msra.mxu0 0.0
      %378 = vmatprep.subr.mxu0 0.0
      %379 = vmatpush1.msra.mxu0 0.0
      %380 = vmatprep.subr.mxu0 0.0
      %381 = vmatpush1.msra.mxu0 0.0
      %382 = vmatprep.subr.mxu0 0.0
      %383 = vmatpush1.msra.mxu0 0.0
      %384 = vmatprep.subr.mxu0 0.0
      %385 = vmatpush1.msra.mxu0 0.0
      %386 = vmatprep.subr.mxu0 0.0
      %387 = vmatpush1.msra.mxu0 0.0
      %388 = vmatprep.subr.mxu0 0.0
      %389 = vmatpush1.msra.mxu0 0.0
      %390 = vmatprep.subr.mxu0 0.0
      %391 = vmatpush1.msra.mxu0 0.0
      %392 = vmatprep.subr.mxu0 0.0
      %393 = vmatpush1.msra.mxu0 0.0
      %394 = vmatprep.subr.mxu0 0.0
      %395 = vmatpush1.msra.mxu0 0.0
      %396 = vmatprep.subr.mxu0 0.0
      %397 = vmatpush1.msra.mxu0 0.0
      %398 = vmatprep.subr.mxu0 0.0
      %399 = vmatpush1.msra.mxu0 0.0
      %400 = vmatprep.subr.mxu0 0.0
      %401 = vmatpush1.msra.mxu0 0.0
      %402 = vmatprep.subr.mxu0 0.0
      %403 = vmatpush1.msra.mxu0 0.0
      %404 = vmatprep.subr.mxu0 0.0
      %405 = vmatpush1.msra.mxu0 0.0
      %406 = vmatprep.subr.mxu0 0.0
      %407 = vmatpush1.msra.mxu0 0.0
      %408 = vmatprep.subr.mxu0 0.0
      %409 = vmatpush1.msra.mxu0 0.0
      %410 = vmatprep.subr.mxu0 0.0
      %411 = vmatpush1.msra.mxu0 0.0
      %412 = vmatprep.subr.mxu0 0.0
      %413 = vmatpush1.msra.mxu0 0.0
      %414 = vmatprep.subr.mxu0 0.0
      %415 = vmatpush1.msra.mxu0 0.0
      %416 = vmatprep.subr.mxu0 0.0
      %417 = vmatpush1.msra.mxu0 0.0
      %418 = vmatprep.subr.mxu0 0.0
      %419 = vmatpush1.msra.mxu0 0.0
      %420 = vmatprep.subr.mxu0 0.0
      %421 = vmatpush1.msra.mxu0 0.0
      %422 = vmatprep.subr.mxu0 0.0
      %423 = vmatpush1.msra.mxu0 0.0
      %424 = vmatprep.subr.mxu0 0.0
      %425 = vmatpush1.msra.mxu0 0.0
      %426 = vmatprep.mubr.f32.mxu0 0.0
      %427 = vmatmul.mubr.f32.gmra.mrb[0].mxu0 %v360
      %v428 = vpop.f32.mrb[0].mxu0
      %v429 = vadd.f32 %v356, %v428
      %v430 = vpop.f32.mrb[0].mxu0
      %v431 = vadd.f32 %v356, %v430
      %432 = vdwg.mxu0
      %v433 = vmax.f32 %v429, 0.0
      %v434 = vmax.f32 %v431, 0.0
      %437 = vrot.lane.b32.xlu0 %v433, 112
      %v438 = vpop.permute.xlu0 %437
      %439 = vrot.lane.b32.xlu0 %v434, 112
      %v440 = vpop.permute.xlu0 %439
      %v441 = vsel %vm339, %v438, %v440
      %444 = vrot.lane.b32.xlu0 %v433, 96
      %v445 = vpop.permute.xlu0 %444
      %446 = vrot.lane.b32.xlu0 %v434, 96
      %v447 = vpop.permute.xlu0 %446
      %v448 = vsel %vm347, %v445, %v447
      %v451 = vld [vmem:[%s3] sm:$0xff]
      %v452 = vld [vmem:[%s4] sm:$0xff]
      %454 = vset.pattern.permute.xlu0 0
      %455 = vperm.xlu0 %454, %v452
      %v456 = vpop.permute.xlu0 %455
      %v459 = vsel %vm358, %v451, 0
      %461 = vmatprep.subr.mxu0 %v434
      %462 = vmatpush1.msra.mxu0 %v433
      %463 = vmatprep.subr.mxu0 %v440
      %464 = vmatpush1.msra.mxu0 %v441
      %465 = vmatprep.subr.mxu0 %v447
      %466 = vmatpush1.msra.mxu0 %v448
      %467 = vmatprep.subr.mxu0 0.0
      %468 = vmatpush1.msra.mxu0 0.0
      %469 = vmatprep.subr.mxu0 0.0
      %470 = vmatpush1.msra.mxu0 0.0
      %471 = vmatprep.subr.mxu0 0.0
      %472 = vmatpush1.msra.mxu0 0.0
      %473 = vmatprep.subr.mxu0 0.0
      %474 = vmatpush1.msra.mxu0 0.0
      %475 = vmatprep.subr.mxu0 0.0
      %476 = vmatpush1.msra.mxu0 0.0
      %477 = vmatprep.subr.mxu0 0.0
      %478 = vmatpush1.msra.mxu0 0.0
      %479 = vmatprep.subr.mxu0 0.0
      %480 = vmatpush1.msra.mxu0 0.0
      %481 = vmatprep.subr.mxu0 0.0
      %482 = vmatpush1.msra.mxu0 0.0
      %483 = vmatprep.subr.mxu0 0.0
      %484 = vmatpush1.msra.mxu0 0.0
      %485 = vmatprep.subr.mxu0 0.0
      %486 = vmatpush1.msra.mxu0 0.0
      %487 = vmatprep.subr.mxu0 0.0
      %488 = vmatpush1.msra.mxu0 0.0
      %489 = vmatprep.subr.mxu0 0.0
      %490 = vmatpush1.msra.mxu0 0.0
      %491 = vmatprep.subr.mxu0 0.0
      %492 = vmatpush1.msra.mxu0 0.0
      %493 = vmatprep.subr.mxu0 0.0
      %494 = vmatpush1.msra.mxu0 0.0
      %495 = vmatprep.subr.mxu0 0.0
      %496 = vmatpush1.msra.mxu0 0.0
      %497 = vmatprep.subr.mxu0 0.0
      %498 = vmatpush1.msra.mxu0 0.0
      %499 = vmatprep.subr.mxu0 0.0
      %500 = vmatpush1.msra.mxu0 0.0
      %501 = vmatprep.subr.mxu0 0.0
      %502 = vmatpush1.msra.mxu0 0.0
      %503 = vmatprep.subr.mxu0 0.0
      %504 = vmatpush1.msra.mxu0 0.0
      %505 = vmatprep.subr.mxu0 0.0
      %506 = vmatpush1.msra.mxu0 0.0
      %507 = vmatprep.subr.mxu0 0.0
      %508 = vmatpush1.msra.mxu0 0.0
      %509 = vmatprep.subr.mxu0 0.0
      %510 = vmatpush1.msra.mxu0 0.0
      %511 = vmatprep.subr.mxu0 0.0
      %512 = vmatpush1.msra.mxu0 0.0
      %513 = vmatprep.subr.mxu0 0.0
      %514 = vmatpush1.msra.mxu0 0.0
      %515 = vmatprep.subr.mxu0 0.0
      %516 = vmatpush1.msra.mxu0 0.0
      %517 = vmatprep.subr.mxu0 0.0
      %518 = vmatpush1.msra.mxu0 0.0
      %519 = vmatprep.subr.mxu0 0.0
      %520 = vmatpush1.msra.mxu0 0.0
      %521 = vmatprep.subr.mxu0 0.0
      %522 = vmatpush1.msra.mxu0 0.0
      %523 = vmatprep.subr.mxu0 0.0
      %524 = vmatpush1.msra.mxu0 0.0
      %525 = vmatprep.mubr.f32.mxu0 0.0
      %526 = vmatmul.mubr.f32.gmra.mrb[0].mxu0 %v459
      %v527 = vpop.f32.mrb[0].mxu0
      %v528 = vadd.f32 %v456, %v527
      %v529 = vpop.f32.mrb[0].mxu0
      %v530 = vadd.f32 %v456, %v529
      %531 = vdwg.mxu0
      %v532 = vmax.f32 %v528, 0.0
      %v533 = vmax.f32 %v530, 0.0
      %536 = vrot.lane.b32.xlu0 %v532, 112
      %v537 = vpop.permute.xlu0 %536
      %538 = vrot.lane.b32.xlu0 %v533, 112
      %v539 = vpop.permute.xlu0 %538
      %v540 = vsel %vm339, %v537, %v539
      %543 = vrot.lane.b32.xlu0 %v532, 96
      %v544 = vpop.permute.xlu0 %543
      %545 = vrot.lane.b32.xlu0 %v533, 96
      %v546 = vpop.permute.xlu0 %545
      %v547 = vsel %vm347, %v544, %v546
      %v550 = vld [vmem:[%s5] sm:$0xff]
      %v551 = vld [vmem:[%s6] sm:$0xff]
      %553 = vset.pattern.permute.xlu0 0
      %554 = vperm.xlu0 %553, %v551
      %v555 = vpop.permute.xlu0 %554
      %v558 = vsel %vm358, %v550, 0
      %560 = vmatprep.subr.mxu0 %v533
      %561 = vmatpush1.msra.mxu0 %v532
      %562 = vmatprep.subr.mxu0 %v539
      %563 = vmatpush1.msra.mxu0 %v540
      %564 = vmatprep.subr.mxu0 %v546
      %565 = vmatpush1.msra.mxu0 %v547
      %566 = vmatprep.subr.mxu0 0.0
      %567 = vmatpush1.msra.mxu0 0.0
      %568 = vmatprep.subr.mxu0 0.0
      %569 = vmatpush1.msra.mxu0 0.0
      %570 = vmatprep.subr.mxu0 0.0
      %571 = vmatpush1.msra.mxu0 0.0
      %572 = vmatprep.subr.mxu0 0.0
      %573 = vmatpush1.msra.mxu0 0.0
      %574 = vmatprep.subr.mxu0 0.0
      %575 = vmatpush1.msra.mxu0 0.0
      %576 = vmatprep.subr.mxu0 0.0
      %577 = vmatpush1.msra.mxu0 0.0
      %578 = vmatprep.subr.mxu0 0.0
      %579 = vmatpush1.msra.mxu0 0.0
      %580 = vmatprep.subr.mxu0 0.0
      %581 = vmatpush1.msra.mxu0 0.0
      %582 = vmatprep.subr.mxu0 0.0
      %583 = vmatpush1.msra.mxu0 0.0
      %584 = vmatprep.subr.mxu0 0.0
      %585 = vmatpush1.msra.mxu0 0.0
      %586 = vmatprep.subr.mxu0 0.0
      %587 = vmatpush1.msra.mxu0 0.0
      %588 = vmatprep.subr.mxu0 0.0
      %589 = vmatpush1.msra.mxu0 0.0
      %590 = vmatprep.subr.mxu0 0.0
      %591 = vmatpush1.msra.mxu0 0.0
      %592 = vmatprep.subr.mxu0 0.0
      %593 = vmatpush1.msra.mxu0 0.0
      %594 = vmatprep.subr.mxu0 0.0
      %595 = vmatpush1.msra.mxu0 0.0
      %596 = vmatprep.subr.mxu0 0.0
      %597 = vmatpush1.msra.mxu0 0.0
      %598 = vmatprep.subr.mxu0 0.0
      %599 = vmatpush1.msra.mxu0 0.0
      %600 = vmatprep.subr.mxu0 0.0
      %601 = vmatpush1.msra.mxu0 0.0
      %602 = vmatprep.subr.mxu0 0.0
      %603 = vmatpush1.msra.mxu0 0.0
      %604 = vmatprep.subr.mxu0 0.0
      %605 = vmatpush1.msra.mxu0 0.0
      %606 = vmatprep.subr.mxu0 0.0
      %607 = vmatpush1.msra.mxu0 0.0
      %608 = vmatprep.subr.mxu0 0.0
      %609 = vmatpush1.msra.mxu0 0.0
      %610 = vmatprep.subr.mxu0 0.0
      %611 = vmatpush1.msra.mxu0 0.0
      %612 = vmatprep.subr.mxu0 0.0
      %613 = vmatpush1.msra.mxu0 0.0
      %614 = vmatprep.subr.mxu0 0.0
      %615 = vmatpush1.msra.mxu0 0.0
      %616 = vmatprep.subr.mxu0 0.0
      %617 = vmatpush1.msra.mxu0 0.0
      %618 = vmatprep.subr.mxu0 0.0
      %619 = vmatpush1.msra.mxu0 0.0
      %620 = vmatprep.subr.mxu0 0.0
      %621 = vmatpush1.msra.mxu0 0.0
      %622 = vmatprep.subr.mxu0 0.0
      %623 = vmatpush1.msra.mxu0 0.0
      %624 = vmatprep.mubr.f32.mxu0 0.0
      %625 = vmatmul.mubr.f32.gmra.mrb[0].mxu0 %v558
      %v626 = vpop.f32.mrb[0].mxu0
      %v627 = vadd.f32 %v555, %v626
      %v628 = vpop.f32.mrb[0].mxu0
      %v629 = vadd.f32 %v555, %v628
      %630 = vdwg.mxu0
      %v631 = vmax.f32 %v627, 0.0
      %v632 = vmax.f32 %v629, 0.0
      %635 = vrot.lane.b32.xlu0 %v631, 112
      %v636 = vpop.permute.xlu0 %635
      %637 = vrot.lane.b32.xlu0 %v632, 112
      %v638 = vpop.permute.xlu0 %637
      %v639 = vsel %vm339, %v636, %v638
      %641 = vrot.lane.b32.xlu0 %v631, 96
      %v642 = vpop.permute.xlu0 %641
      %643 = vrot.lane.b32.xlu0 %v632, 96
      %v644 = vpop.permute.xlu0 %643
      %v645 = vsel %vm347, %v642, %v644
      %v647 = vld [vmem:[%s7] sm:$0xff]
      %v648 = vld [vmem:[%s8] sm:$0xff]
      %650 = vset.pattern.permute.xlu0 0
      %651 = vperm.xlu0 %650, %v648
      %v652 = vpop.permute.xlu0 %651
      %v655 = vsel %vm358, %v647, 0
      %657 = vmatprep.subr.mxu0 0.0
      %658 = vmatpush1.msra.mxu0 %v631
      %659 = vmatprep.subr.mxu0 0.0
      %660 = vmatpush1.msra.mxu0 %v639
      %661 = vmatprep.subr.mxu0 0.0
      %662 = vmatpush1.msra.mxu0 %v645
      %663 = vmatprep.subr.mxu0 0.0
      %664 = vmatpush1.msra.mxu0 0.0
      %665 = vmatprep.subr.mxu0 0.0
      %666 = vmatpush1.msra.mxu0 0.0
      %667 = vmatprep.subr.mxu0 0.0
      %668 = vmatpush1.msra.mxu0 0.0
      %669 = vmatprep.subr.mxu0 0.0
      %670 = vmatpush1.msra.mxu0 0.0
      %671 = vmatprep.subr.mxu0 0.0
      %672 = vmatpush1.msra.mxu0 0.0
      %673 = vmatprep.subr.mxu0 0.0
      %674 = vmatpush1.msra.mxu0 0.0
      %675 = vmatprep.subr.mxu0 0.0
      %676 = vmatpush1.msra.mxu0 0.0
      %677 = vmatprep.subr.mxu0 0.0
      %678 = vmatpush1.msra.mxu0 0.0
      %679 = vmatprep.subr.mxu0 0.0
      %680 = vmatpush1.msra.mxu0 0.0
      %681 = vmatprep.subr.mxu0 0.0
      %682 = vmatpush1.msra.mxu0 0.0
      %683 = vmatprep.subr.mxu0 0.0
      %684 = vmatpush1.msra.mxu0 0.0
      %685 = vmatprep.subr.mxu0 0.0
      %686 = vmatpush1.msra.mxu0 0.0
      %687 = vmatprep.subr.mxu0 0.0
      %688 = vmatpush1.msra.mxu0 0.0
      %689 = vmatprep.subr.mxu0 0.0
      %690 = vmatpush1.msra.mxu0 0.0
      %691 = vmatprep.subr.mxu0 0.0
      %692 = vmatpush1.msra.mxu0 0.0
      %693 = vmatprep.subr.mxu0 0.0
      %694 = vmatpush1.msra.mxu0 0.0
      %695 = vmatprep.subr.mxu0 0.0
      %696 = vmatpush1.msra.mxu0 0.0
      %697 = vmatprep.subr.mxu0 0.0
      %698 = vmatpush1.msra.mxu0 0.0
      %699 = vmatprep.subr.mxu0 0.0
      %700 = vmatpush1.msra.mxu0 0.0
      %701 = vmatprep.subr.mxu0 0.0
      %702 = vmatpush1.msra.mxu0 0.0
      %703 = vmatprep.subr.mxu0 0.0
      %704 = vmatpush1.msra.mxu0 0.0
      %705 = vmatprep.subr.mxu0 0.0
      %706 = vmatpush1.msra.mxu0 0.0
      %707 = vmatprep.subr.mxu0 0.0
      %708 = vmatpush1.msra.mxu0 0.0
      %709 = vmatprep.subr.mxu0 0.0
      %710 = vmatpush1.msra.mxu0 0.0
      %711 = vmatprep.subr.mxu0 0.0
      %712 = vmatpush1.msra.mxu0 0.0
      %713 = vmatprep.subr.mxu0 0.0
      %714 = vmatpush1.msra.mxu0 0.0
      %715 = vmatprep.subr.mxu0 0.0
      %716 = vmatpush1.msra.mxu0 0.0
      %717 = vmatprep.subr.mxu0 0.0
      %718 = vmatpush1.msra.mxu0 0.0
      %719 = vmatprep.subr.mxu0 0.0
      %720 = vmatpush1.msra.mxu0 0.0
      %721 = vmatprep.mubr.f32.mxu0 0.0
      %722 = vmatmul.mubr.f32.gmra.mrb[0].mxu0 %v655
      %v723 = vpop.f32.mrb[0].mxu0
      %v724 = vadd.f32 %v652, %v723
      %v725 = vpop.f32.mrb[0].mxu0
      %726 = vdwg.mxu0
      %v727 = vmax.f32 %v724, 0.0
      %728 = vst [vmem:[%s330] sm:$0xff] %v727
      %p729 = scmp.lt.s32.totalorder %s20, 1
      %s730 = scalar_select %p729, %s20, 1
      %s731 = smul.addr %s730, 8
      %s732 = scalar_lea.vmem %s9, %s731
      // Predicated region
      $region57: #{tcnn_block_pallas.1} parent=55 // pred_check
        %p733 = pneg %p232
      $region58: #{tcnn_block_pallas.1} parent=55 // pred_check_branch
        %735 = sbr.rel (%p733) target = $region60
      $region59: #{tcnn_block_pallas.1} parent=55 // pred_region
        _
      $region60: #{tcnn_block_pallas.1} parent=55 // pred_fallthru
        _
    $region56: #{tcnn_block_pallas.1} parent=5 // pred_fallthru
      _
    %p736 = scmp.le.s32.totalorder 2, %s15
    // Predicated region
    $region61: #{tcnn_block_pallas.1} parent=5 // pred_check
      %p737 = pneg %p736
    $region62: #{tcnn_block_pallas.1} parent=5 // pred_check_branch
      %739 = sbr.rel (%p737) target = $region64
    $region63: #{tcnn_block_pallas.1} parent=5 // pred_region
      %s740 = ssub.s32 %s15, 2
      // Predicated region
      $region65: #{tcnn_block_pallas.1} parent=63 // pred_check
        %p741 = pneg %p238
      $region66: #{tcnn_block_pallas.1} parent=63 // pred_check_branch
        %743 = sbr.rel (%p741) target = $region68
      $region67: #{tcnn_block_pallas.1} parent=63 // pred_region
        %p744 = scmp.lt.s32.totalorder %s21, 1
        %s745 = scalar_select %p744, %s21, 1
        %s746 = smul.addr %s745, 8
        %s747 = scalar_lea.vmem %s9, %s746
      $region68: #{tcnn_block_pallas.1} parent=63 // pred_fallthru
        _
    $region64: #{tcnn_block_pallas.1} parent=5 // pred_fallthru
      _
  $region6: #{tcnn_block_pallas.1} parent=0 // loop_footer
    %s19 = sadd.s32 1, %s15
  $region7: #{tcnn_block_pallas.1} parent=0 // loop_footer_branch
    %14 = sbr.rel target = $region3
  $region8: #{tcnn_block_pallas.1} parent=0 // loop_exit
    _

</llo_original>
